<compile_context>
chip_gen: v7x
topology: tpu7x:2x2x1
jax: 0.10.0
libtpu: 0.0.40
codegen_flags: <defaults>
</compile_context>

<pallas_src>
import jax
import jax.numpy as jnp
from jax.experimental import pallas as pl
from jax.experimental.pallas import tpu as pltpu

_FEATURES = 8
_SAMPLES_PER_ROW = 128 // _FEATURES  # 16 samples per lane-dense row


def _round_up(n, m):
    return ((n + m - 1) // m) * m


def _linear_sigmoid_kernel(x_ref, w_ref, b_ref, o_ref):
    # x_ref: (TR, 128) VMEM — 16 samples per row, 8 features each (native layout).
    # w_ref: (128, 16) VMEM — block-diagonal scatter weight, W[8*s + f, s] = w[f].
    # b_ref: (1,)      SMEM — bias.
    # o_ref: (TR, 16)  VMEM — per-sample probabilities.
    z = jnp.dot(
        x_ref[...],
        w_ref[...],
        preferred_element_type=jnp.float32,
        precision=jax.lax.Precision.HIGHEST,
    )
    z = z + b_ref[0]
    # Exact sigmoid as a single EUP op (tanh form); no approx rcp, no exp overflow.
    o_ref[...] = (0.5 * jnp.tanh(0.5 * z) + 0.5).astype(o_ref.dtype)


def binary_classifier_forward(x, weight, bias, *, block_batch=16384):
    """Forward pass of BinaryClassifier: sigmoid(x @ weight.T + bias).

    x:      (B, 8) float array (f32 or bf16; other dtypes are cast to f32)
    weight: (1, 8) float array (PyTorch nn.Linear layout)
    bias:   (1,)   float array
    block_batch: samples per grid step (rounded to a multiple of 16).
    returns (B, 1) probabilities.
    """
    B, F = x.shape
    assert F == _FEATURES, "BinaryClassifier expects 8 input features"

    # Keep bf16 activations as-is (halves DMA bytes); everything else -> f32.
    compute_dtype = x.dtype if x.dtype in (jnp.bfloat16, jnp.float32) else jnp.float32
    out_dtype = jnp.float32 if compute_dtype == jnp.float32 else compute_dtype
    x = x.astype(compute_dtype)  # no-op for f32/bf16 inputs

    # Pad batch only up to a multiple of 128 samples (=> reshaped rows are a
    # multiple of 8 sublanes); no pad / no copy when B is already aligned.
    Bp = _round_up(B, 128)
    if Bp != B:
        x = jnp.pad(x, ((0, Bp - B), (0, 0)))
    R = Bp // _SAMPLES_PER_ROW           # lane-dense rows, always a multiple of 8
    xr = x.reshape(R, 128)               # contiguous -> zero-copy reshape

    # Block-diagonal scatter weight so (R,128) @ (128,16) == per-sample 8-wide dot.
    w_vec = weight.reshape(F).astype(compute_dtype)
    w_scatter = (
        jnp.eye(_SAMPLES_PER_ROW, dtype=compute_dtype)[:, None, :]
        * w_vec[None, :, None]
    ).reshape(128, _SAMPLES_PER_ROW)
    b = bias.reshape(1).astype(jnp.float32)

    # Rows per grid step: honor block_batch, but cap so the grid has >= ~8 steps
    # (keeps both v7x TensorCores busy and gives each core pipelining headroom).
    tr = max(8, _round_up(max(block_batch, _SAMPLES_PER_ROW), _SAMPLES_PER_ROW)
             // _SAMPLES_PER_ROW)
    tr = min(tr, _round_up(pl.cdiv(R, 8), 8))
    grid = pl.cdiv(R, tr)

    out = pl.pallas_call(
        _linear_sigmoid_kernel,
        out_shape=jax.ShapeDtypeStruct((R, _SAMPLES_PER_ROW), out_dtype),
        grid_spec=pl.GridSpec(
            grid=(grid,),
            in_specs=[
                pl.BlockSpec((tr, 128), lambda i: (i, 0)),                 # x rows
                pl.BlockSpec((128, _SAMPLES_PER_ROW), lambda i: (0, 0)),   # weight (resident)
                pl.BlockSpec(memory_space=pltpu.MemorySpace.SMEM),         # bias scalar
            ],
            out_specs=pl.BlockSpec((tr, _SAMPLES_PER_ROW), lambda i: (i, 0)),
        ),
        compiler_params=pltpu.CompilerParams(
            dimension_semantics=("parallel",),  # batch tiles are independent
        ),
    )(xr, w_scatter, b)

    probs = out.reshape(Bp, 1)   # contiguous -> zero-copy reshape
    if Bp != B:
        probs = probs[:B]        # only the ragged-tail case pays a small slice copy
    return probs


if __name__ == "__main__":
    key = jax.random.PRNGKey(0)
    kx, kw, kb = jax.random.split(key, 3)

    # Small batch that is NOT a multiple of 128: exercises the 128-pad path, the
    # zero-copy reshape, and (with a small block_batch) a multi-step pipelined grid.
    B, F = 1000, 8
    x = jax.random.normal(kx, (B, F), dtype=jnp.float32)

    # Deterministic params mimicking nn.Linear's uniform(-1/sqrt(in), 1/sqrt(in)).
    bound = 1.0 / jnp.sqrt(jnp.float32(F))
    weight = jax.random.uniform(kw, (1, F), minval=-bound, maxval=bound, dtype=jnp.float32)
    bias = jax.random.uniform(kb, (1,), minval=-bound, maxval=bound, dtype=jnp.float32)

    out = binary_classifier_forward(x, weight, bias, block_batch=256)  # multi-step grid
    out = jax.block_until_ready(out)

    # Reference in plain JAX; kernel math is exact (f32 MXU + tanh-form sigmoid),
    # so the tolerance is tight.
    ref = jax.nn.sigmoid(
        jnp.dot(x, weight.T, precision=jax.lax.Precision.HIGHEST) + bias
    )
    assert out.shape == (B, 1)
    assert bool(jnp.allclose(out, ref, atol=1e-4, rtol=1e-4)), "mismatch vs reference"

    print("KERNEL_OK")
</pallas_src>

<mosaic_0001>
module attributes {stable_mosaic.version = 11 : i64} {
  func.func @_linear_sigmoid_kernel(%arg0: i32, %arg1: memref<8x128xf32, #tpu.memory_space<vmem>>, %arg2: memref<128x16xf32, #tpu.memory_space<vmem>>, %arg3: memref<1xf32, #tpu.memory_space<smem>>, %arg4: memref<8x16xf32, #tpu.memory_space<vmem>>) attributes {dimension_semantics = [#tpu.dimension_semantics<parallel>], iteration_bounds = array<i64: 8>, scalar_prefetch = 0 : i64, scratch_operands = 0 : i64, tpu.core_type = #tpu.core_type<tc>, window_params = [{transform_indices = @transform_0, window_bounds = array<i64: 8, 128>}, {pipeline_mode = #tpu.pipeline_mode<synchronous>, transform_indices = @transform_1, window_bounds = array<i64: 128, 16>}, {transform_indices = @transform_2, window_bounds = array<i64: 1>}, {transform_indices = @transform_3, window_bounds = array<i64: 8, 16>}]} {
    %c0 = arith.constant 0 : index
    %c0_0 = arith.constant 0 : index
    %0 = vector.load %arg1[%c0, %c0_0] : memref<8x128xf32, #tpu.memory_space<vmem>>, vector<8x128xf32>
    %c0_1 = arith.constant 0 : index
    %c0_2 = arith.constant 0 : index
    %1 = vector.load %arg2[%c0_1, %c0_2] : memref<128x16xf32, #tpu.memory_space<vmem>>, vector<128x16xf32>
    %cst = arith.constant dense<0.000000e+00> : vector<8x16xf32>
    %2 = tpu.matmul %0, %1, %cst {dimension_numbers = #tpu.dot_dimension_numbers<[1], [0], [0], [1], [0, 0, 1, 1], [], []>, precision = #tpu.contract_precision<fp32>} : vector<8x128xf32>, vector<128x16xf32>, vector<8x16xf32> -> vector<8x16xf32>
    %c0_3 = arith.constant 0 : index
    %3 = memref.load %arg3[%c0_3] : memref<1xf32, #tpu.memory_space<smem>>
    %4 = vector.broadcast %3 : f32 to vector<8x16xf32>
    %5 = arith.addf %2, %4 : vector<8x16xf32>
    %cst_4 = arith.constant 5.000000e-01 : f32
    %6 = vector.broadcast %cst_4 : f32 to vector<8x16xf32>
    %7 = arith.mulf %6, %5 : vector<8x16xf32>
    %8 = math.tanh %7 : vector<8x16xf32>
    %cst_5 = arith.constant 5.000000e-01 : f32
    %9 = vector.broadcast %cst_5 : f32 to vector<8x16xf32>
    %10 = arith.mulf %9, %8 : vector<8x16xf32>
    %cst_6 = arith.constant 5.000000e-01 : f32
    %11 = vector.broadcast %cst_6 : f32 to vector<8x16xf32>
    %12 = arith.addf %10, %11 : vector<8x16xf32>
    %c0_7 = arith.constant 0 : index
    %c0_8 = arith.constant 0 : index
    %13 = vector.load %arg4[%c0_7, %c0_8] : memref<8x16xf32, #tpu.memory_space<vmem>>, vector<8x16xf32>
    tpu.vector_store %arg4[%c0_7, %c0_8], %12 {strides = array<i32>} : memref<8x16xf32, #tpu.memory_space<vmem>>, vector<8x16xf32>,
    return
  }
  func.func @transform_0(%arg0: i32) -> (i32, i32) {
    %c0_i32 = arith.constant 0 : i32
    %c0_i32_0 = arith.constant 0 : i32
    return %arg0, %c0_i32 : i32, i32
  }
  func.func @transform_1(%arg0: i32) -> (i32, i32) {
    %c0_i32 = arith.constant 0 : i32
    %c0_i32_0 = arith.constant 0 : i32
    %c0_i32_1 = arith.constant 0 : i32
    return %c0_i32, %c0_i32_0 : i32, i32
  }
  func.func @transform_2(%arg0: i32) -> i32 {
    %c0_i32 = arith.constant 0 : i32
    %c0_i32_0 = arith.constant 0 : i32
    return %c0_i32 : i32
  }
  func.func @transform_3(%arg0: i32) -> (i32, i32) {
    %c0_i32 = arith.constant 0 : i32
    %c0_i32_0 = arith.constant 0 : i32
    return %arg0, %c0_i32 : i32, i32
  }
}

</mosaic_0001>

<llo_original>
// kernel: tpu_custom_call.1
$region0: #{tpu_custom_call.1}
  #allocation0 [shape = 'u32[]', space=smem, size = 0x4, offset = 0x4, fixed_abs, tag = 'smem constant byte address 0x4 - core index']
  #allocation1 [shape = 'u32[144,128]{1,0:T(1,128)}', space=vmem, size = 0x12000, scoped, tag = 'internal scratch']
  #allocation2 [shape = 'f32[1]{0:T(128)S(6)}', space=smem, size = 0x200, scoped, tag = 'scoped memory for tpu_custom_call.1']
  %s0 = inlined_call_operand.vmem [shape: f32[64,128], index: 0, kind: input, shape index: {}]
  %s1 = inlined_call_operand.vmem [shape: f32[128,16], index: 1, kind: input, shape index: {}]
  %s2 = inlined_call_operand.<no memory space> [shape: f32[1], index: 2, kind: input, shape index: {}]
  %s3 = inlined_call_operand.vmem [shape: f32[64,16], index: 3, kind: output, shape index: {}]
  %s4 = sld [smem:[#allocation0]]
  $region45: #{tpu_custom_call.1} parent=0
    _
  %s6 = ssub.s32 1, %s4
  %s7 = scalar_select 0, %s6, %s4
  %8 = sst [smem:[#allocation2]] %s2
  loop: start=0, step=1, limit=10
  $region2: #{tpu_custom_call.1} parent=0 // loop_pre_header
    _
  $region3: #{tpu_custom_call.1} parent=0 // loop_header
    %s10 = sphi 0, %s14
    %p11 = scmp.ge.s32.totalorder %s10, 10
    %s20 = sphi 0, %s22
    %s23 = sphi 0, %s20
    %s24 = sphi 0, %s23
    %s40 = sphi 0, %s24
    %s44 = sphi 0, %s44
    %s46 = sphi 0, %s44
    %s47 = sphi 0, %s46
    %s61 = sphi 0, %s47
    %s65 = sphi 0, %s65
    %s67 = sphi 0, %s65
    %s68 = sphi 0, %s67
    %s82 = sphi 0, %s68
    %s88 = sphi 0, %s90
    %s91 = sphi 0, %s88
    %s92 = sphi 0, %s91
    %s108 = sphi 0, %s92
  $region4: #{tpu_custom_call.1} parent=0 // loop_header_branch
    %13 = sbr.rel (%p11) target = $region8
  $region5: #{tpu_custom_call.1} parent=0 // loop_body
    %s15 = ssub.s32 %s10, 1
    %s16 = ssub.s32 %s10, 2
    %s17 = sadd.s32 %s10, 1
    %s18 = ssub.s32 %s10, %s17
    %p19 = scmp.eq.s32.totalorder %s18, 0
    %s21 = sadd.s32 %s20, 1
    %s22 = scalar_select %p19, %s20, %s21
    %p25 = pneg %p19
    %p26 = scmp.eq.s32.totalorder %s10, 7
    %p27 = por %p25, %p26
    %p28 = scmp.ne.s32.totalorder %s20, %s23
    %p29 = scmp.eq.s32.totalorder %s10, 0
    %p30 = por %p28, %p29
    %p31 = scmp.ne.s32.totalorder %s20, %s23
    %p32 = scmp.eq.s32.totalorder %s15, 7
    %p33 = por %p31, %p32
    %p34 = scmp.ne.s32.totalorder %s23, %s24
    %p35 = scmp.eq.s32.totalorder %s15, 0
    %p36 = por %p34, %p35
    %p37 = scmp.ne.s32.totalorder %s23, %s24
    %p38 = scmp.eq.s32.totalorder %s16, 7
    %p39 = por %p37, %p38
    %p41 = scmp.ne.s32.totalorder %s24, %s40
    %p42 = scmp.eq.s32.totalorder %s16, 0
    %p43 = por %p41, %p42
    %s45 = sadd.s32 %s44, 1
    %p48 = scmp.eq.s32.totalorder %s10, 7
    %p49 = scmp.ne.s32.totalorder %s44, %s46
    %p50 = scmp.eq.s32.totalorder %s10, 0
    %p51 = por %p49, %p50
    %p52 = scmp.ne.s32.totalorder %s44, %s46
    %p53 = scmp.eq.s32.totalorder %s15, 7
    %p54 = por %p52, %p53
    %p55 = scmp.ne.s32.totalorder %s46, %s47
    %p56 = scmp.eq.s32.totalorder %s15, 0
    %p57 = por %p55, %p56
    %p58 = scmp.ne.s32.totalorder %s46, %s47
    %p59 = scmp.eq.s32.totalorder %s16, 7
    %p60 = por %p58, %p59
    %p62 = scmp.ne.s32.totalorder %s47, %s61
    %p63 = scmp.eq.s32.totalorder %s16, 0
    %p64 = por %p62, %p63
    %s66 = sadd.s32 %s65, 1
    %p69 = scmp.eq.s32.totalorder %s10, 7
    %p70 = scmp.ne.s32.totalorder %s65, %s67
    %p71 = scmp.eq.s32.totalorder %s10, 0
    %p72 = por %p70, %p71
    %p73 = scmp.ne.s32.totalorder %s65, %s67
    %p74 = scmp.eq.s32.totalorder %s15, 7
    %p75 = por %p73, %p74
    %p76 = scmp.ne.s32.totalorder %s67, %s68
    %p77 = scmp.eq.s32.totalorder %s15, 0
    %p78 = por %p76, %p77
    %p79 = scmp.ne.s32.totalorder %s67, %s68
    %p80 = scmp.eq.s32.totalorder %s16, 7
    %p81 = por %p79, %p80
    %p83 = scmp.ne.s32.totalorder %s68, %s82
    %p84 = scmp.eq.s32.totalorder %s16, 0
    %p85 = por %p83, %p84
    %s86 = ssub.s32 %s10, %s17
    %p87 = scmp.eq.s32.totalorder %s86, 0
    %s89 = sadd.s32 %s88, 1
    %s90 = scalar_select %p87, %s88, %s89
    %p93 = pneg %p87
    %p94 = scmp.eq.s32.totalorder %s10, 7
    %p95 = por %p93, %p94
    %p96 = scmp.ne.s32.totalorder %s88, %s91
    %p97 = scmp.eq.s32.totalorder %s10, 0
    %p98 = por %p96, %p97
    %p99 = scmp.ne.s32.totalorder %s88, %s91
    %p100 = scmp.eq.s32.totalorder %s15, 7
    %p101 = por %p99, %p100
    %p102 = scmp.ne.s32.totalorder %s91, %s92
    %p103 = scmp.eq.s32.totalorder %s15, 0
    %p104 = por %p102, %p103
    %p105 = scmp.ne.s32.totalorder %s91, %s92
    %p106 = scmp.eq.s32.totalorder %s16, 7
    %p107 = por %p105, %p106
    %p109 = scmp.ne.s32.totalorder %s92, %s108
    %p110 = scmp.eq.s32.totalorder %s16, 0
    %p111 = por %p109, %p110
    %p112 = scmp.le.s32.totalorder 1, %s10
    %p113 = scmp.lt.s32.totalorder %s10, 9
    %p114 = pnand %p112, %p113
    %p115 = pneg %p114
    // Predicated region
    $region9: #{tpu_custom_call.1} parent=5 // pred_check
      _
    $region10: #{tpu_custom_call.1} parent=5 // pred_check_branch
      %117 = sbr.rel (%p114) target = $region12
    $region11: #{tpu_custom_call.1} parent=5 // pred_region
      %s118 = ssub.s32 %s10, 1
      // Predicated region
      $region13: #{tpu_custom_call.1} parent=11 // pred_check
        %p119 = pneg %p57
      $region14: #{tpu_custom_call.1} parent=11 // pred_check_branch
        %121 = sbr.rel (%p119) target = $region16
      $region15: #{tpu_custom_call.1} parent=11 // pred_region
        _
      $region16: #{tpu_custom_call.1} parent=11 // pred_fallthru
        _
      // Predicated region
      $region17: #{tpu_custom_call.1} parent=11 // pred_check
        %p122 = pneg %p78
      $region18: #{tpu_custom_call.1} parent=11 // pred_check_branch
        %124 = sbr.rel (%p122) target = $region20
      $region19: #{tpu_custom_call.1} parent=11 // pred_region
        _
      $region20: #{tpu_custom_call.1} parent=11 // pred_fallthru
        _
    $region12: #{tpu_custom_call.1} parent=5 // pred_fallthru
      _
    %p125 = scmp.lt.s32.totalorder %s10, 8
    // Predicated region
    $region21: #{tpu_custom_call.1} parent=5 // pred_check
      %p126 = pneg %p125
    $region22: #{tpu_custom_call.1} parent=5 // pred_check_branch
      %128 = sbr.rel (%p126) target = $region24
    $region23: #{tpu_custom_call.1} parent=5 // pred_region
      // Predicated region
      $region25: #{tpu_custom_call.1} parent=23 // pred_check
        %p129 = pneg %p30
      $region26: #{tpu_custom_call.1} parent=23 // pred_check_branch
        %131 = sbr.rel (%p129) target = $region28
      $region27: #{tpu_custom_call.1} parent=23 // pred_region
        %p132 = scmp.lt.s32.totalorder %s10, 7
        %s133 = scalar_select %p132, %s10, 7
        %s134 = smul.addr %s133, 8
        %s135 = scalar_lea.vmem %s0, %s134
      $region28: #{tpu_custom_call.1} parent=23 // pred_fallthru
        _
    $region24: #{tpu_custom_call.1} parent=5 // pred_fallthru
      _
    %p136 = scmp.le.s32.totalorder 1, %s10
    %p137 = scmp.lt.s32.totalorder %s10, 9
    %p138 = pnand %p136, %p137
    %p139 = pneg %p138
    // Predicated region
    $region29: #{tpu_custom_call.1} parent=5 // pred_check
      _
    $region30: #{tpu_custom_call.1} parent=5 // pred_check_branch
      %141 = sbr.rel (%p138) target = $region32
    $region31: #{tpu_custom_call.1} parent=5 // pred_region
      %s142 = ssub.s32 %s10, 1
      %p143 = scmp.lt.s32.totalorder %s15, 7
      %s144 = scalar_select %p143, %s15, 7
      %s145 = smul.addr %s144, 8
      %s146 = scalar_lea.vmem %s0, %s145
      %p147 = pneg %p36
      %p148 = pneg %p33
      %p149 = pneg %p57
      %p150 = pneg %p54
      %p151 = pneg %p78
      %p152 = pneg %p75
      %p153 = pneg %p104
      %p154 = pneg %p101
      %p155 = scmp.lt.s32.totalorder %s15, 7
      %s156 = scalar_select %p155, %s15, 7
      %s157 = smul.addr %s156, 8
      %s158 = scalar_lea.vmem %s3, %s157
      %p159 = scmp.lt.s32.totalorder %s15, 7
      %s160 = scalar_select %p159, %s15, 7
      %s161 = smul.addr %s160, 8
      %s162 = scalar_lea.vmem %s0, %s161
      %p163 = scmp.lt.s32.totalorder %s15, 7
      %s164 = scalar_select %p163, %s15, 7
      %s165 = smul.addr %s164, 8
      %s166 = scalar_lea.vmem %s3, %s165
      %v167 = vld [vmem:[%s162] sm:$0xff]
      %v168 = vld [vmem:[%s1] sm:$0xff]
      %v169 = vld [vmem:[%s1 + $0x8] sm:$0xff]
      %v170 = vld [vmem:[%s1 + $0x10] sm:$0xff]
      %v171 = vld [vmem:[%s1 + $0x18] sm:$0xff]
      %v172 = vld [vmem:[%s1 + $0x20] sm:$0xff]
      %v173 = vld [vmem:[%s1 + $0x28] sm:$0xff]
      %v174 = vld [vmem:[%s1 + $0x30] sm:$0xff]
      %v175 = vld [vmem:[%s1 + $0x38] sm:$0xff]
      %v176 = vld [vmem:[%s1 + $0x40] sm:$0xff]
      %v177 = vld [vmem:[%s1 + $0x48] sm:$0xff]
      %v178 = vld [vmem:[%s1 + $0x50] sm:$0xff]
      %v179 = vld [vmem:[%s1 + $0x58] sm:$0xff]
      %v180 = vld [vmem:[%s1 + $0x60] sm:$0xff]
      %v181 = vld [vmem:[%s1 + $0x68] sm:$0xff]
      %v182 = vld [vmem:[%s1 + $0x70] sm:$0xff]
      %v183 = vld [vmem:[%s1 + $0x78] sm:$0xff]
      %s184 = sld [smem:[#allocation2]]
      %v185 = vstv %s184
      %186 = vmatprep.subr.mxu0 0.0
      %v187 = vand.u32 %v168, 4294901760
      %188 = vmatpush1.msra.mxu0 %v187
      %189 = vmatprep.subr.mxu0 0.0
      %v190 = vand.u32 %v169, 4294901760
      %191 = vmatpush1.msra.mxu0 %v190
      %192 = vmatprep.subr.mxu0 0.0
      %v193 = vand.u32 %v170, 4294901760
      %194 = vmatpush1.msra.mxu0 %v193
      %195 = vmatprep.subr.mxu0 0.0
      %v196 = vand.u32 %v171, 4294901760
      %197 = vmatpush1.msra.mxu0 %v196
      %198 = vmatprep.subr.mxu0 0.0
      %v199 = vand.u32 %v172, 4294901760
      %200 = vmatpush1.msra.mxu0 %v199
      %201 = vmatprep.subr.mxu0 0.0
      %v202 = vand.u32 %v173, 4294901760
      %203 = vmatpush1.msra.mxu0 %v202
      %204 = vmatprep.subr.mxu0 0.0
      %v205 = vand.u32 %v174, 4294901760
      %206 = vmatpush1.msra.mxu0 %v205
      %207 = vmatprep.subr.mxu0 0.0
      %v208 = vand.u32 %v175, 4294901760
      %209 = vmatpush1.msra.mxu0 %v208
      %210 = vmatprep.subr.mxu0 0.0
      %v211 = vand.u32 %v176, 4294901760
      %212 = vmatpush1.msra.mxu0 %v211
      %213 = vmatprep.subr.mxu0 0.0
      %v214 = vand.u32 %v177, 4294901760
      %215 = vmatpush1.msra.mxu0 %v214
      %216 = vmatprep.subr.mxu0 0.0
      %v217 = vand.u32 %v178, 4294901760
      %218 = vmatpush1.msra.mxu0 %v217
      %219 = vmatprep.subr.mxu0 0.0
      %v220 = vand.u32 %v179, 4294901760
      %221 = vmatpush1.msra.mxu0 %v220
      %222 = vmatprep.subr.mxu0 0.0
      %v223 = vand.u32 %v180, 4294901760
      %224 = vmatpush1.msra.mxu0 %v223
      %225 = vmatprep.subr.mxu0 0.0
      %v226 = vand.u32 %v181, 4294901760
      %227 = vmatpush1.msra.mxu0 %v226
      %228 = vmatprep.subr.mxu0 0.0
      %v229 = vand.u32 %v182, 4294901760
      %230 = vmatpush1.msra.mxu0 %v229
      %231 = vmatprep.subr.mxu0 0.0
      %v232 = vand.u32 %v183, 4294901760
      %233 = vmatpush1.msra.mxu0 %v232
      %234 = vmatprep.subr.mxu0 0.0
      %235 = vmatpush1.msra.mxu0 0.0
      %236 = vmatprep.subr.mxu0 0.0
      %237 = vmatpush1.msra.mxu0 0.0
      %238 = vmatprep.subr.mxu0 0.0
      %239 = vmatpush1.msra.mxu0 0.0
      %240 = vmatprep.subr.mxu0 0.0
      %241 = vmatpush1.msra.mxu0 0.0
      %242 = vmatprep.subr.mxu0 0.0
      %243 = vmatpush1.msra.mxu0 0.0
      %244 = vmatprep.subr.mxu0 0.0
      %245 = vmatpush1.msra.mxu0 0.0
      %246 = vmatprep.subr.mxu0 0.0
      %247 = vmatpush1.msra.mxu0 0.0
      %248 = vmatprep.subr.mxu0 0.0
      %249 = vmatpush1.msra.mxu0 0.0
      %250 = vmatprep.subr.mxu0 0.0
      %251 = vmatpush1.msra.mxu0 0.0
      %252 = vmatprep.subr.mxu0 0.0
      %253 = vmatpush1.msra.mxu0 0.0
      %254 = vmatprep.subr.mxu0 0.0
      %255 = vmatpush1.msra.mxu0 0.0
      %256 = vmatprep.subr.mxu0 0.0
      %257 = vmatpush1.msra.mxu0 0.0
      %258 = vmatprep.subr.mxu0 0.0
      %259 = vmatpush1.msra.mxu0 0.0
      %260 = vmatprep.subr.mxu0 0.0
      %261 = vmatpush1.msra.mxu0 0.0
      %262 = vmatprep.subr.mxu0 0.0
      %263 = vmatpush1.msra.mxu0 0.0
      %264 = vmatprep.subr.mxu0 0.0
      %265 = vmatpush1.msra.mxu0 0.0
      %266 = vmatprep.mubr.f32.mxu0 0.0
      %v267 = vand.u32 %v167, 4294901760
      %v268 = vsub.f32 %v167, %v267
      %v269 = vand.u32 %v268, 4294901760
      %v270 = vsub.f32 %v268, %v269
      %v271 = vand.u32 %v270, 4294901760
      %272 = vmatmul.mubr.f32.gmra.mrb[0].mxu0 %v271
      %v273 = vpop.f32.mrb[0].mxu0
      %v274 = vadd.f32 %v185, %v273
      %v275 = vpop.f32.mrb[0].mxu0
      %276 = vdwg.mxu0
      %277 = vmatprep.subr.mxu0 0.0
      %v278 = vand.u32 %v168, 4294901760
      %v279 = vsub.f32 %v168, %v278
      %v280 = vand.u32 %v279, 4294901760
      %v281 = vsub.f32 %v279, %v280
      %v282 = vand.u32 %v281, 4294901760
      %283 = vmatpush1.msra.mxu0 %v282
      %284 = vmatprep.subr.mxu0 0.0
      %v285 = vand.u32 %v169, 4294901760
      %v286 = vsub.f32 %v169, %v285
      %v287 = vand.u32 %v286, 4294901760
      %v288 = vsub.f32 %v286, %v287
      %v289 = vand.u32 %v288, 4294901760
      %290 = vmatpush1.msra.mxu0 %v289
      %291 = vmatprep.subr.mxu0 0.0
      %v292 = vand.u32 %v170, 4294901760
      %v293 = vsub.f32 %v170, %v292
      %v294 = vand.u32 %v293, 4294901760
      %v295 = vsub.f32 %v293, %v294
      %v296 = vand.u32 %v295, 4294901760
      %297 = vmatpush1.msra.mxu0 %v296
      %298 = vmatprep.subr.mxu0 0.0
      %v299 = vand.u32 %v171, 4294901760
      %v300 = vsub.f32 %v171, %v299
      %v301 = vand.u32 %v300, 4294901760
      %v302 = vsub.f32 %v300, %v301
      %v303 = vand.u32 %v302, 4294901760
      %304 = vmatpush1.msra.mxu0 %v303
      %305 = vmatprep.subr.mxu0 0.0
      %v306 = vand.u32 %v172, 4294901760
      %v307 = vsub.f32 %v172, %v306
      %v308 = vand.u32 %v307, 4294901760
      %v309 = vsub.f32 %v307, %v308
      %v310 = vand.u32 %v309, 4294901760
      %311 = vmatpush1.msra.mxu0 %v310
      %312 = vmatprep.subr.mxu0 0.0
      %v313 = vand.u32 %v173, 4294901760
      %v314 = vsub.f32 %v173, %v313
      %v315 = vand.u32 %v314, 4294901760
      %v316 = vsub.f32 %v314, %v315
      %v317 = vand.u32 %v316, 4294901760
      %318 = vmatpush1.msra.mxu0 %v317
      %319 = vmatprep.subr.mxu0 0.0
      %v320 = vand.u32 %v174, 4294901760
      %v321 = vsub.f32 %v174, %v320
      %v322 = vand.u32 %v321, 4294901760
      %v323 = vsub.f32 %v321, %v322
      %v324 = vand.u32 %v323, 4294901760
      %325 = vmatpush1.msra.mxu0 %v324
      %326 = vmatprep.subr.mxu0 0.0
      %v327 = vand.u32 %v175, 4294901760
      %v328 = vsub.f32 %v175, %v327
      %v329 = vand.u32 %v328, 4294901760
      %v330 = vsub.f32 %v328, %v329
      %v331 = vand.u32 %v330, 4294901760
      %332 = vmatpush1.msra.mxu0 %v331
      %333 = vmatprep.subr.mxu0 0.0
      %v334 = vand.u32 %v176, 4294901760
      %v335 = vsub.f32 %v176, %v334
      %v336 = vand.u32 %v335, 4294901760
      %v337 = vsub.f32 %v335, %v336
      %v338 = vand.u32 %v337, 4294901760
      %339 = vmatpush1.msra.mxu0 %v338
      %340 = vmatprep.subr.mxu0 0.0
      %v341 = vand.u32 %v177, 4294901760
      %v342 = vsub.f32 %v177, %v341
      %v343 = vand.u32 %v342, 4294901760
      %v344 = vsub.f32 %v342, %v343
      %v345 = vand.u32 %v344, 4294901760
      %346 = vmatpush1.msra.mxu0 %v345
      %347 = vmatprep.subr.mxu0 0.0
      %v348 = vand.u32 %v178, 4294901760
      %v349 = vsub.f32 %v178, %v348
      %v350 = vand.u32 %v349, 4294901760
      %v351 = vsub.f32 %v349, %v350
      %v352 = vand.u32 %v351, 4294901760
      %353 = vmatpush1.msra.mxu0 %v352
      %354 = vmatprep.subr.mxu0 0.0
      %v355 = vand.u32 %v179, 4294901760
      %v356 = vsub.f32 %v179, %v355
      %v357 = vand.u32 %v356, 4294901760
      %v358 = vsub.f32 %v356, %v357
      %v359 = vand.u32 %v358, 4294901760
      %360 = vmatpush1.msra.mxu0 %v359
      %361 = vmatprep.subr.mxu0 0.0
      %v362 = vand.u32 %v180, 4294901760
      %v363 = vsub.f32 %v180, %v362
      %v364 = vand.u32 %v363, 4294901760
      %v365 = vsub.f32 %v363, %v364
      %v366 = vand.u32 %v365, 4294901760
      %367 = vmatpush1.msra.mxu0 %v366
      %368 = vmatprep.subr.mxu0 0.0
      %v369 = vand.u32 %v181, 4294901760
      %v370 = vsub.f32 %v181, %v369
      %v371 = vand.u32 %v370, 4294901760
      %v372 = vsub.f32 %v370, %v371
      %v373 = vand.u32 %v372, 4294901760
      %374 = vmatpush1.msra.mxu0 %v373
      %375 = vmatprep.subr.mxu0 0.0
      %v376 = vand.u32 %v182, 4294901760
      %v377 = vsub.f32 %v182, %v376
      %v378 = vand.u32 %v377, 4294901760
      %v379 = vsub.f32 %v377, %v378
      %v380 = vand.u32 %v379, 4294901760
      %381 = vmatpush1.msra.mxu0 %v380
      %382 = vmatprep.subr.mxu0 0.0
      %v383 = vand.u32 %v183, 4294901760
      %v384 = vsub.f32 %v183, %v383
      %v385 = vand.u32 %v384, 4294901760
      %v386 = vsub.f32 %v384, %v385
      %v387 = vand.u32 %v386, 4294901760
      %388 = vmatpush1.msra.mxu0 %v387
      %389 = vmatprep.subr.mxu0 0.0
      %390 = vmatpush1.msra.mxu0 0.0
      %391 = vmatprep.subr.mxu0 0.0
      %392 = vmatpush1.msra.mxu0 0.0
      %393 = vmatprep.subr.mxu0 0.0
      %394 = vmatpush1.msra.mxu0 0.0
      %395 = vmatprep.subr.mxu0 0.0
      %396 = vmatpush1.msra.mxu0 0.0
      %397 = vmatprep.subr.mxu0 0.0
      %398 = vmatpush1.msra.mxu0 0.0
      %399 = vmatprep.subr.mxu0 0.0
      %400 = vmatpush1.msra.mxu0 0.0
      %401 = vmatprep.subr.mxu0 0.0
      %402 = vmatpush1.msra.mxu0 0.0
      %403 = vmatprep.subr.mxu0 0.0
      %404 = vmatpush1.msra.mxu0 0.0
      %405 = vmatprep.subr.mxu0 0.0
      %406 = vmatpush1.msra.mxu0 0.0
      %407 = vmatprep.subr.mxu0 0.0
      %408 = vmatpush1.msra.mxu0 0.0
      %409 = vmatprep.subr.mxu0 0.0
      %410 = vmatpush1.msra.mxu0 0.0
      %411 = vmatprep.subr.mxu0 0.0
      %412 = vmatpush1.msra.mxu0 0.0
      %413 = vmatprep.subr.mxu0 0.0
      %414 = vmatpush1.msra.mxu0 0.0
      %415 = vmatprep.subr.mxu0 0.0
      %416 = vmatpush1.msra.mxu0 0.0
      %417 = vmatprep.subr.mxu0 0.0
      %418 = vmatpush1.msra.mxu0 0.0
      %419 = vmatprep.subr.mxu0 0.0
      %420 = vmatpush1.msra.mxu0 0.0
      %421 = vmatprep.mubr.f32.mxu0 0.0
      %v422 = vand.u32 %v167, 4294901760
      %423 = vmatmul.mubr.f32.gmra.mrb[0].mxu0 %v422
      %v424 = vpop.f32.mrb[0].mxu0
      %v425 = vadd.f32 %v274, %v424
      %v426 = vpop.f32.mrb[0].mxu0
      %427 = vdwg.mxu0
      %428 = vmatprep.subr.mxu0 0.0
      %v429 = vand.u32 %v168, 4294901760
      %v430 = vsub.f32 %v168, %v429
      %431 = vmatpush1.msra.mxu0 %v430
      %432 = vmatprep.subr.mxu0 0.0
      %v433 = vand.u32 %v169, 4294901760
      %v434 = vsub.f32 %v169, %v433
      %435 = vmatpush1.msra.mxu0 %v434
      %436 = vmatprep.subr.mxu0 0.0
      %v437 = vand.u32 %v170, 4294901760
      %v438 = vsub.f32 %v170, %v437
      %439 = vmatpush1.msra.mxu0 %v438
      %440 = vmatprep.subr.mxu0 0.0
      %v441 = vand.u32 %v171, 4294901760
      %v442 = vsub.f32 %v171, %v441
      %443 = vmatpush1.msra.mxu0 %v442
      %444 = vmatprep.subr.mxu0 0.0
      %v445 = vand.u32 %v172, 4294901760
      %v446 = vsub.f32 %v172, %v445
      %447 = vmatpush1.msra.mxu0 %v446
      %448 = vmatprep.subr.mxu0 0.0
      %v449 = vand.u32 %v173, 4294901760
      %v450 = vsub.f32 %v173, %v449
      %451 = vmatpush1.msra.mxu0 %v450
      %452 = vmatprep.subr.mxu0 0.0
      %v453 = vand.u32 %v174, 4294901760
      %v454 = vsub.f32 %v174, %v453
      %455 = vmatpush1.msra.mxu0 %v454
      %456 = vmatprep.subr.mxu0 0.0
      %v457 = vand.u32 %v175, 4294901760
      %v458 = vsub.f32 %v175, %v457
      %459 = vmatpush1.msra.mxu0 %v458
      %460 = vmatprep.subr.mxu0 0.0
      %v461 = vand.u32 %v176, 4294901760
      %v462 = vsub.f32 %v176, %v461
      %463 = vmatpush1.msra.mxu0 %v462
      %464 = vmatprep.subr.mxu0 0.0
      %v465 = vand.u32 %v177, 4294901760
      %v466 = vsub.f32 %v177, %v465
      %467 = vmatpush1.msra.mxu0 %v466
      %468 = vmatprep.subr.mxu0 0.0
      %v469 = vand.u32 %v178, 4294901760
      %v470 = vsub.f32 %v178, %v469
      %471 = vmatpush1.msra.mxu0 %v470
      %472 = vmatprep.subr.mxu0 0.0
      %v473 = vand.u32 %v179, 4294901760
      %v474 = vsub.f32 %v179, %v473
      %475 = vmatpush1.msra.mxu0 %v474
      %476 = vmatprep.subr.mxu0 0.0
      %v477 = vand.u32 %v180, 4294901760
      %v478 = vsub.f32 %v180, %v477
      %479 = vmatpush1.msra.mxu0 %v478
      %480 = vmatprep.subr.mxu0 0.0
      %v481 = vand.u32 %v181, 4294901760
      %v482 = vsub.f32 %v181, %v481
      %483 = vmatpush1.msra.mxu0 %v482
      %484 = vmatprep.subr.mxu0 0.0
      %v485 = vand.u32 %v182, 4294901760
      %v486 = vsub.f32 %v182, %v485
      %487 = vmatpush1.msra.mxu0 %v486
      %488 = vmatprep.subr.mxu0 0.0
      %v489 = vand.u32 %v183, 4294901760
      %v490 = vsub.f32 %v183, %v489
      %491 = vmatpush1.msra.mxu0 %v490
      %492 = vmatprep.subr.mxu0 0.0
      %493 = vmatpush1.msra.mxu0 0.0
      %494 = vmatprep.subr.mxu0 0.0
      %495 = vmatpush1.msra.mxu0 0.0
      %496 = vmatprep.subr.mxu0 0.0
      %497 = vmatpush1.msra.mxu0 0.0
      %498 = vmatprep.subr.mxu0 0.0
      %499 = vmatpush1.msra.mxu0 0.0
      %500 = vmatprep.subr.mxu0 0.0
      %501 = vmatpush1.msra.mxu0 0.0
      %502 = vmatprep.subr.mxu0 0.0
      %503 = vmatpush1.msra.mxu0 0.0
      %504 = vmatprep.subr.mxu0 0.0
      %505 = vmatpush1.msra.mxu0 0.0
      %506 = vmatprep.subr.mxu0 0.0
      %507 = vmatpush1.msra.mxu0 0.0
      %508 = vmatprep.subr.mxu0 0.0
      %509 = vmatpush1.msra.mxu0 0.0
      %510 = vmatprep.subr.mxu0 0.0
      %511 = vmatpush1.msra.mxu0 0.0
      %512 = vmatprep.subr.mxu0 0.0
      %513 = vmatpush1.msra.mxu0 0.0
      %514 = vmatprep.subr.mxu0 0.0
      %515 = vmatpush1.msra.mxu0 0.0
      %516 = vmatprep.subr.mxu0 0.0
      %517 = vmatpush1.msra.mxu0 0.0
      %518 = vmatprep.subr.mxu0 0.0
      %519 = vmatpush1.msra.mxu0 0.0
      %520 = vmatprep.subr.mxu0 0.0
      %521 = vmatpush1.msra.mxu0 0.0
      %522 = vmatprep.subr.mxu0 0.0
      %523 = vmatpush1.msra.mxu0 0.0
      %524 = vmatprep.mubr.f32.mxu0 0.0
      %v525 = vand.u32 %v167, 4294901760
      %v526 = vsub.f32 %v167, %v525
      %527 = vmatmul.mubr.f32.gmra.mrb[0].mxu0 %v526
      %v528 = vpop.f32.mrb[0].mxu0
      %v529 = vadd.f32 %v425, %v528
      %v530 = vpop.f32.mrb[0].mxu0
      %531 = vdwg.mxu0
      %532 = vmatprep.subr.mxu0 0.0
      %v533 = vand.u32 %v168, 4294901760
      %534 = vmatpush1.msra.mxu0 %v533
      %535 = vmatprep.subr.mxu0 0.0
      %v536 = vand.u32 %v169, 4294901760
      %537 = vmatpush1.msra.mxu0 %v536
      %538 = vmatprep.subr.mxu0 0.0
      %v539 = vand.u32 %v170, 4294901760
      %540 = vmatpush1.msra.mxu0 %v539
      %541 = vmatprep.subr.mxu0 0.0
      %v542 = vand.u32 %v171, 4294901760
      %543 = vmatpush1.msra.mxu0 %v542
      %544 = vmatprep.subr.mxu0 0.0
      %v545 = vand.u32 %v172, 4294901760
      %546 = vmatpush1.msra.mxu0 %v545
      %547 = vmatprep.subr.mxu0 0.0
      %v548 = vand.u32 %v173, 4294901760
      %549 = vmatpush1.msra.mxu0 %v548
      %550 = vmatprep.subr.mxu0 0.0
      %v551 = vand.u32 %v174, 4294901760
      %552 = vmatpush1.msra.mxu0 %v551
      %553 = vmatprep.subr.mxu0 0.0
      %v554 = vand.u32 %v175, 4294901760
      %555 = vmatpush1.msra.mxu0 %v554
      %556 = vmatprep.subr.mxu0 0.0
      %v557 = vand.u32 %v176, 4294901760
      %558 = vmatpush1.msra.mxu0 %v557
      %559 = vmatprep.subr.mxu0 0.0
      %v560 = vand.u32 %v177, 4294901760
      %561 = vmatpush1.msra.mxu0 %v560
      %562 = vmatprep.subr.mxu0 0.0
      %v563 = vand.u32 %v178, 4294901760
      %564 = vmatpush1.msra.mxu0 %v563
      %565 = vmatprep.subr.mxu0 0.0
      %v566 = vand.u32 %v179, 4294901760
      %567 = vmatpush1.msra.mxu0 %v566
      %568 = vmatprep.subr.mxu0 0.0
      %v569 = vand.u32 %v180, 4294901760
      %570 = vmatpush1.msra.mxu0 %v569
      %571 = vmatprep.subr.mxu0 0.0
      %v572 = vand.u32 %v181, 4294901760
      %573 = vmatpush1.msra.mxu0 %v572
      %574 = vmatprep.subr.mxu0 0.0
      %v575 = vand.u32 %v182, 4294901760
      %576 = vmatpush1.msra.mxu0 %v575
      %577 = vmatprep.subr.mxu0 0.0
      %v578 = vand.u32 %v183, 4294901760
      %579 = vmatpush1.msra.mxu0 %v578
      %580 = vmatprep.subr.mxu0 0.0
      %581 = vmatpush1.msra.mxu0 0.0
      %582 = vmatprep.subr.mxu0 0.0
      %583 = vmatpush1.msra.mxu0 0.0
      %584 = vmatprep.subr.mxu0 0.0
      %585 = vmatpush1.msra.mxu0 0.0
      %586 = vmatprep.subr.mxu0 0.0
      %587 = vmatpush1.msra.mxu0 0.0
      %588 = vmatprep.subr.mxu0 0.0
      %589 = vmatpush1.msra.mxu0 0.0
      %590 = vmatprep.subr.mxu0 0.0
      %591 = vmatpush1.msra.mxu0 0.0
      %592 = vmatprep.subr.mxu0 0.0
      %593 = vmatpush1.msra.mxu0 0.0
      %594 = vmatprep.subr.mxu0 0.0
      %595 = vmatpush1.msra.mxu0 0.0
      %596 = vmatprep.subr.mxu0 0.0
      %597 = vmatpush1.msra.mxu0 0.0
      %598 = vmatprep.subr.mxu0 0.0
      %599 = vmatpush1.msra.mxu0 0.0
      %600 = vmatprep.subr.mxu0 0.0
      %601 = vmatpush1.msra.mxu0 0.0
      %602 = vmatprep.subr.mxu0 0.0
      %603 = vmatpush1.msra.mxu0 0.0
      %604 = vmatprep.subr.mxu0 0.0
      %605 = vmatpush1.msra.mxu0 0.0
      %606 = vmatprep.subr.mxu0 0.0
      %607 = vmatpush1.msra.mxu0 0.0
      %608 = vmatprep.subr.mxu0 0.0
      %609 = vmatpush1.msra.mxu0 0.0
      %610 = vmatprep.subr.mxu0 0.0
      %611 = vmatpush1.msra.mxu0 0.0
      %612 = vmatprep.mubr.f32.mxu0 0.0
      %v613 = vand.u32 %v167, 4294901760
      %v614 = vsub.f32 %v167, %v613
      %v615 = vand.u32 %v614, 4294901760
      %616 = vmatmul.mubr.f32.gmra.mrb[0].mxu0 %v615
      %v617 = vpop.f32.mrb[0].mxu0
      %v618 = vadd.f32 %v529, %v617
      %v619 = vpop.f32.mrb[0].mxu0
      %620 = vdwg.mxu0
      %621 = vmatprep.subr.mxu0 0.0
      %v622 = vand.u32 %v168, 4294901760
      %v623 = vsub.f32 %v168, %v622
      %v624 = vand.u32 %v623, 4294901760
      %625 = vmatpush1.msra.mxu0 %v624
      %626 = vmatprep.subr.mxu0 0.0
      %v627 = vand.u32 %v169, 4294901760
      %v628 = vsub.f32 %v169, %v627
      %v629 = vand.u32 %v628, 4294901760
      %630 = vmatpush1.msra.mxu0 %v629
      %631 = vmatprep.subr.mxu0 0.0
      %v632 = vand.u32 %v170, 4294901760
      %v633 = vsub.f32 %v170, %v632
      %v634 = vand.u32 %v633, 4294901760
      %635 = vmatpush1.msra.mxu0 %v634
      %636 = vmatprep.subr.mxu0 0.0
      %v637 = vand.u32 %v171, 4294901760
      %v638 = vsub.f32 %v171, %v637
      %v639 = vand.u32 %v638, 4294901760
      %640 = vmatpush1.msra.mxu0 %v639
      %641 = vmatprep.subr.mxu0 0.0
      %v642 = vand.u32 %v172, 4294901760
      %v643 = vsub.f32 %v172, %v642
      %v644 = vand.u32 %v643, 4294901760
      %645 = vmatpush1.msra.mxu0 %v644
      %646 = vmatprep.subr.mxu0 0.0
      %v647 = vand.u32 %v173, 4294901760
      %v648 = vsub.f32 %v173, %v647
      %v649 = vand.u32 %v648, 4294901760
      %650 = vmatpush1.msra.mxu0 %v649
      %651 = vmatprep.subr.mxu0 0.0
      %v652 = vand.u32 %v174, 4294901760
      %v653 = vsub.f32 %v174, %v652
      %v654 = vand.u32 %v653, 4294901760
      %655 = vmatpush1.msra.mxu0 %v654
      %656 = vmatprep.subr.mxu0 0.0
      %v657 = vand.u32 %v175, 4294901760
      %v658 = vsub.f32 %v175, %v657
      %v659 = vand.u32 %v658, 4294901760
      %660 = vmatpush1.msra.mxu0 %v659
      %661 = vmatprep.subr.mxu0 0.0
      %v662 = vand.u32 %v176, 4294901760
      %v663 = vsub.f32 %v176, %v662
      %v664 = vand.u32 %v663, 4294901760
      %665 = vmatpush1.msra.mxu0 %v664
      %666 = vmatprep.subr.mxu0 0.0
      %v667 = vand.u32 %v177, 4294901760
      %v668 = vsub.f32 %v177, %v667
      %v669 = vand.u32 %v668, 4294901760
      %670 = vmatpush1.msra.mxu0 %v669
      %671 = vmatprep.subr.mxu0 0.0
      %v672 = vand.u32 %v178, 4294901760
      %v673 = vsub.f32 %v178, %v672
      %v674 = vand.u32 %v673, 4294901760
      %675 = vmatpush1.msra.mxu0 %v674
      %676 = vmatprep.subr.mxu0 0.0
      %v677 = vand.u32 %v179, 4294901760
      %v678 = vsub.f32 %v179, %v677
      %v679 = vand.u32 %v678, 4294901760
      %680 = vmatpush1.msra.mxu0 %v679
      %681 = vmatprep.subr.mxu0 0.0
      %v682 = vand.u32 %v180, 4294901760
      %v683 = vsub.f32 %v180, %v682
      %v684 = vand.u32 %v683, 4294901760
      %685 = vmatpush1.msra.mxu0 %v684
      %686 = vmatprep.subr.mxu0 0.0
      %v687 = vand.u32 %v181, 4294901760
      %v688 = vsub.f32 %v181, %v687
      %v689 = vand.u32 %v688, 4294901760
      %690 = vmatpush1.msra.mxu0 %v689
      %691 = vmatprep.subr.mxu0 0.0
      %v692 = vand.u32 %v182, 4294901760
      %v693 = vsub.f32 %v182, %v692
      %v694 = vand.u32 %v693, 4294901760
      %695 = vmatpush1.msra.mxu0 %v694
      %696 = vmatprep.subr.mxu0 0.0
      %v697 = vand.u32 %v183, 4294901760
      %v698 = vsub.f32 %v183, %v697
      %v699 = vand.u32 %v698, 4294901760
      %700 = vmatpush1.msra.mxu0 %v699
      %701 = vmatprep.subr.mxu0 0.0
      %702 = vmatpush1.msra.mxu0 0.0
      %703 = vmatprep.subr.mxu0 0.0
      %704 = vmatpush1.msra.mxu0 0.0
      %705 = vmatprep.subr.mxu0 0.0
      %706 = vmatpush1.msra.mxu0 0.0
      %707 = vmatprep.subr.mxu0 0.0
      %708 = vmatpush1.msra.mxu0 0.0
      %709 = vmatprep.subr.mxu0 0.0
      %710 = vmatpush1.msra.mxu0 0.0
      %711 = vmatprep.subr.mxu0 0.0
      %712 = vmatpush1.msra.mxu0 0.0
      %713 = vmatprep.subr.mxu0 0.0
      %714 = vmatpush1.msra.mxu0 0.0
      %715 = vmatprep.subr.mxu0 0.0
      %716 = vmatpush1.msra.mxu0 0.0
      %717 = vmatprep.subr.mxu0 0.0
      %718 = vmatpush1.msra.mxu0 0.0
      %719 = vmatprep.subr.mxu0 0.0
      %720 = vmatpush1.msra.mxu0 0.0
      %721 = vmatprep.subr.mxu0 0.0
      %722 = vmatpush1.msra.mxu0 0.0
      %723 = vmatprep.subr.mxu0 0.0
      %724 = vmatpush1.msra.mxu0 0.0
      %725 = vmatprep.subr.mxu0 0.0
      %726 = vmatpush1.msra.mxu0 0.0
      %727 = vmatprep.subr.mxu0 0.0
      %728 = vmatpush1.msra.mxu0 0.0
      %729 = vmatprep.subr.mxu0 0.0
      %730 = vmatpush1.msra.mxu0 0.0
      %731 = vmatprep.subr.mxu0 0.0
      %732 = vmatpush1.msra.mxu0 0.0
      %733 = vmatprep.mubr.f32.mxu0 0.0
      %v734 = vand.u32 %v167, 4294901760
      %735 = vmatmul.mubr.f32.gmra.mrb[0].mxu0 %v734
      %v736 = vpop.f32.mrb[0].mxu0
      %v737 = vadd.f32 %v618, %v736
      %v738 = vpop.f32.mrb[0].mxu0
      %739 = vdwg.mxu0
      %740 = vmatprep.subr.mxu0 0.0
      %v741 = vand.u32 %v168, 4294901760
      %742 = vmatpush1.msra.mxu0 %v741
      %743 = vmatprep.subr.mxu0 0.0
      %v744 = vand.u32 %v169, 4294901760
      %745 = vmatpush1.msra.mxu0 %v744
      %746 = vmatprep.subr.mxu0 0.0
      %v747 = vand.u32 %v170, 4294901760
      %748 = vmatpush1.msra.mxu0 %v747
      %749 = vmatprep.subr.mxu0 0.0
      %v750 = vand.u32 %v171, 4294901760
      %751 = vmatpush1.msra.mxu0 %v750
      %752 = vmatprep.subr.mxu0 0.0
      %v753 = vand.u32 %v172, 4294901760
      %754 = vmatpush1.msra.mxu0 %v753
      %755 = vmatprep.subr.mxu0 0.0
      %v756 = vand.u32 %v173, 4294901760
      %757 = vmatpush1.msra.mxu0 %v756
      %758 = vmatprep.subr.mxu0 0.0
      %v759 = vand.u32 %v174, 4294901760
      %760 = vmatpush1.msra.mxu0 %v759
      %761 = vmatprep.subr.mxu0 0.0
      %v762 = vand.u32 %v175, 4294901760
      %763 = vmatpush1.msra.mxu0 %v762
      %764 = vmatprep.subr.mxu0 0.0
      %v765 = vand.u32 %v176, 4294901760
      %766 = vmatpush1.msra.mxu0 %v765
      %767 = vmatprep.subr.mxu0 0.0
      %v768 = vand.u32 %v177, 4294901760
      %769 = vmatpush1.msra.mxu0 %v768
      %770 = vmatprep.subr.mxu0 0.0
      %v771 = vand.u32 %v178, 4294901760
      %772 = vmatpush1.msra.mxu0 %v771
      %773 = vmatprep.subr.mxu0 0.0
      %v774 = vand.u32 %v179, 4294901760
      %775 = vmatpush1.msra.mxu0 %v774
      %776 = vmatprep.subr.mxu0 0.0
      %v777 = vand.u32 %v180, 4294901760
      %778 = vmatpush1.msra.mxu0 %v777
      %779 = vmatprep.subr.mxu0 0.0
      %v780 = vand.u32 %v181, 4294901760
      %781 = vmatpush1.msra.mxu0 %v780
      %782 = vmatprep.subr.mxu0 0.0
      %v783 = vand.u32 %v182, 4294901760
      %784 = vmatpush1.msra.mxu0 %v783
      %785 = vmatprep.subr.mxu0 0.0
      %v786 = vand.u32 %v183, 4294901760
      %787 = vmatpush1.msra.mxu0 %v786
      %788 = vmatprep.subr.mxu0 0.0
      %789 = vmatpush1.msra.mxu0 0.0
      %790 = vmatprep.subr.mxu0 0.0
      %791 = vmatpush1.msra.mxu0 0.0
      %792 = vmatprep.subr.mxu0 0.0
      %793 = vmatpush1.msra.mxu0 0.0
      %794 = vmatprep.subr.mxu0 0.0
      %795 = vmatpush1.msra.mxu0 0.0
      %796 = vmatprep.subr.mxu0 0.0
      %797 = vmatpush1.msra.mxu0 0.0
      %798 = vmatprep.subr.mxu0 0.0
      %799 = vmatpush1.msra.mxu0 0.0
      %800 = vmatprep.subr.mxu0 0.0
      %801 = vmatpush1.msra.mxu0 0.0
      %802 = vmatprep.subr.mxu0 0.0
      %803 = vmatpush1.msra.mxu0 0.0
      %804 = vmatprep.subr.mxu0 0.0
      %805 = vmatpush1.msra.mxu0 0.0
      %806 = vmatprep.subr.mxu0 0.0
      %807 = vmatpush1.msra.mxu0 0.0
      %808 = vmatprep.subr.mxu0 0.0
      %809 = vmatpush1.msra.mxu0 0.0
      %810 = vmatprep.subr.mxu0 0.0
      %811 = vmatpush1.msra.mxu0 0.0
      %812 = vmatprep.subr.mxu0 0.0
      %813 = vmatpush1.msra.mxu0 0.0
      %814 = vmatprep.subr.mxu0 0.0
      %815 = vmatpush1.msra.mxu0 0.0
      %816 = vmatprep.subr.mxu0 0.0
      %817 = vmatpush1.msra.mxu0 0.0
      %818 = vmatprep.subr.mxu0 0.0
      %819 = vmatpush1.msra.mxu0 0.0
      %820 = vmatprep.mubr.f32.mxu0 0.0
      %v821 = vand.u32 %v167, 4294901760
      %822 = vmatmul.mubr.f32.gmra.mrb[0].mxu0 %v821
      %v823 = vpop.f32.mrb[0].mxu0
      %v824 = vadd.f32 %v737, %v823
      %v825 = vpop.f32.mrb[0].mxu0
      %826 = vdwg.mxu0
      %v827 = vmul.f32 %v824, 0.5
      %v828 = vtanh.pop %v827
      %v829 = vmul.f32 %v828, 0.5
      %v830 = vadd.f32 %v829, 0.5
      %vm831 = vcmask 130048
      %832 = vst.msk [vmem:[%s166] sm:$0xff] %vm831, %v830
      %p833 = scmp.lt.s32.totalorder %s15, 7
      %s834 = scalar_select %p833, %s15, 7
      %s835 = smul.addr %s834, 8
      %s836 = scalar_lea.vmem %s3, %s835
      // Predicated region
      $region33: #{tpu_custom_call.1} parent=31 // pred_check
        %p837 = pneg %p101
      $region34: #{tpu_custom_call.1} parent=31 // pred_check_branch
        %839 = sbr.rel (%p837) target = $region36
      $region35: #{tpu_custom_call.1} parent=31 // pred_region
        _
      $region36: #{tpu_custom_call.1} parent=31 // pred_fallthru
        _
    $region32: #{tpu_custom_call.1} parent=5 // pred_fallthru
      _
    %p840 = scmp.le.s32.totalorder 2, %s10
    // Predicated region
    $region37: #{tpu_custom_call.1} parent=5 // pred_check
      %p841 = pneg %p840
    $region38: #{tpu_custom_call.1} parent=5 // pred_check_branch
      %843 = sbr.rel (%p841) target = $region40
    $region39: #{tpu_custom_call.1} parent=5 // pred_region
      %s844 = ssub.s32 %s10, 2
      // Predicated region
      $region41: #{tpu_custom_call.1} parent=39 // pred_check
        %p845 = pneg %p107
      $region42: #{tpu_custom_call.1} parent=39 // pred_check_branch
        %847 = sbr.rel (%p845) target = $region44
      $region43: #{tpu_custom_call.1} parent=39 // pred_region
        %p848 = scmp.lt.s32.totalorder %s16, 7
        %s849 = scalar_select %p848, %s16, 7
        %s850 = smul.addr %s849, 8
        %s851 = scalar_lea.vmem %s3, %s850
      $region44: #{tpu_custom_call.1} parent=39 // pred_fallthru
        _
    $region40: #{tpu_custom_call.1} parent=5 // pred_fallthru
      _
  $region6: #{tpu_custom_call.1} parent=0 // loop_footer
    %s14 = sadd.s32 1, %s10
  $region7: #{tpu_custom_call.1} parent=0 // loop_footer_branch
    %9 = sbr.rel target = $region3
  $region8: #{tpu_custom_call.1} parent=0 // loop_exit
    _

</llo_original>
